<compile_context>
chip_gen: v7x
topology: tpu7x:2x2x1
jax: 0.10.0
libtpu: 0.0.40
codegen_flags: <defaults>
</compile_context>

<pallas_src>
import jax
import jax.numpy as jnp
from jax import lax
from jax.experimental import pallas as pl
from jax.experimental.pallas import tpu as pltpu

_LANE = 128


def _round_up(x, m):
    return (x + m - 1) // m * m


def _masked_nll_kernel(pred_ref, tgt_ref, msk_ref, w_ref,
                       num_ref, den_ref,
                       num_acc, cnt_acc):
    i = pl.program_id(1)                          # inner ("arbitrary") axis

    @pl.when(i == 0)
    def _init():
        num_acc[...] = jnp.zeros_like(num_acc)
        cnt_acc[...] = jnp.zeros_like(cnt_acc)

    pred = pred_ref[...].astype(jnp.float32)      # (C, T) log-probs, class-major
    tgt = tgt_ref[...]                            # (1, T) int32 targets
    msk = msk_ref[...]                            # (1, T) f32 mask

    C, T = pred.shape
    cls = lax.broadcasted_iota(jnp.int32, (C, T), 0)
    onehot = cls == tgt                           # (C, T) one-hot of target
    moh = jnp.where(onehot, msk, 0.0)             # masked one-hot (C, T)

    # Pure VPU elementwise accumulation; no per-step XLU reductions.
    num_acc[...] += moh * pred
    cnt_acc[...] += moh

    @pl.when(i == pl.num_programs(1) - 1)
    def _finalize():
        w = w_ref[...]                                         # (C, 1)
        num_c = jnp.sum(num_acc[...], axis=1, keepdims=True)   # (C, 1)
        cnt_c = jnp.sum(cnt_acc[...], axis=1, keepdims=True)   # (C, 1)
        num_ref[...] = jnp.sum(w * num_c, axis=0, keepdims=True)   # (1, 1)
        den_ref[...] = jnp.sum(w * cnt_c, axis=0, keepdims=True)   # (1, 1)


def masked_nll_loss(pred, target, mask, weight=None, *,
                    tile_cols=None, n_splits=None,
                    vmem_budget_bytes=12 * 1024 * 1024):
    """Pallas implementation of MaskedNLLLoss.forward. Returns a scalar."""
    N, C = pred.shape
    pred_t = pred.T                                   # (C, N): one cheap transpose
    tgt = target.reshape(1, N).astype(jnp.int32)
    msk = mask.reshape(1, N).astype(jnp.float32)
    if weight is None:
        w = jnp.ones((C, 1), jnp.float32)
    else:
        w = weight.reshape(C, 1).astype(jnp.float32)

    # ----- tiling: size tiles to a real VMEM budget -------------------------
    itemsize = jnp.dtype(pred.dtype).itemsize
    c8 = _round_up(C, 8)
    # per lane-column: double-buffered pred tile + 2 f32 accumulators + tgt/msk
    bytes_per_col = 2 * c8 * itemsize + 2 * c8 * 4 + 2 * (4 + 4)
    if tile_cols is None:
        tile_cols = max(_LANE,
                        (vmem_budget_bytes // bytes_per_col) // _LANE * _LANE)
    if n_splits is None:
        # 2 row-splits let v7x's second TensorCore share the stream; on 1-TC
        # chips it is just two cheap sequential slices.
        n_splits = 2 if _round_up(N, _LANE) >= 2 * _LANE else 1

    per_split = _round_up(pl.cdiv(N, n_splits), _LANE)
    tile_cols = min(tile_cols, per_split)
    per_split = _round_up(per_split, tile_cols)
    n_total = n_splits * per_split
    tiles_per_split = per_split // tile_cols

    # Pad rows; padded rows carry mask==0 so they contribute 0 to num and den.
    pad = n_total - N
    if pad:
        pred_t = jnp.pad(pred_t, ((0, 0), (0, pad)))
        tgt = jnp.pad(tgt, ((0, 0), (0, pad)))
        msk = jnp.pad(msk, ((0, 0), (0, pad)))

    grid = (n_splits, tiles_per_split)
    col_map = lambda p, i: (0, p * tiles_per_split + i)

    cost = pl.CostEstimate(
        flops=5 * n_total * C,
        transcendentals=0,
        bytes_accessed=itemsize * n_total * C
        + 4 * (2 * n_total + C + 2 * n_splits),
    )

    num_out, den_out = pl.pallas_call(
        _masked_nll_kernel,
        out_shape=(jax.ShapeDtypeStruct((n_splits, 1, 1), jnp.float32),
                   jax.ShapeDtypeStruct((n_splits, 1, 1), jnp.float32)),
        grid_spec=pltpu.PrefetchScalarGridSpec(
            num_scalar_prefetch=0,
            grid=grid,
            in_specs=[
                pl.BlockSpec((C, tile_cols), col_map),        # pred, class-major
                pl.BlockSpec((1, tile_cols), col_map),        # targets
                pl.BlockSpec((1, tile_cols), col_map),        # mask
                pl.BlockSpec((C, 1), lambda p, i: (0, 0)),    # class weights
            ],
            out_specs=(
                pl.BlockSpec((None, 1, 1), lambda p, i: (p, 0, 0)),  # num partial
                pl.BlockSpec((None, 1, 1), lambda p, i: (p, 0, 0)),  # den partial
            ),
            scratch_shapes=[pltpu.VMEM((C, tile_cols), jnp.float32),  # num acc
                            pltpu.VMEM((C, tile_cols), jnp.float32)],  # cnt acc
        ),
        compiler_params=pltpu.CompilerParams(
            dimension_semantics=("parallel", "arbitrary"),
            vmem_limit_bytes=48 * 1024 * 1024,   # headroom on v7x's 64 MiB VMEM
        ),
        cost_estimate=cost,
    )(pred_t, tgt, msk, w)

    # Combine per-split partials (tiny). Like PyTorch, an all-zero mask yields
    # NaN/Inf here (division by zero) — intentional parity.
    return -(jnp.sum(num_out) / jnp.sum(den_out))


def _reference(pred, target, mask, weight=None):
    """Pure-JAX transcription of the PyTorch MaskedNLLLoss forward."""
    m = mask.reshape(-1).astype(jnp.float32)
    picked = jnp.take_along_axis(pred, target.reshape(-1, 1), axis=1)[:, 0]
    if weight is None:
        num = jnp.sum(m * picked)
        den = jnp.sum(m)
    else:
        w_t = weight[target]
        num = jnp.sum(w_t * m * picked)
        den = jnp.sum(w_t * m)
    return -num / den


if __name__ == "__main__":
    key = jax.random.PRNGKey(0)
    batch, seq_len, n_classes = 2, 8, 7
    N = batch * seq_len

    k1, k2, k3, k4 = jax.random.split(key, 4)
    logits = jax.random.normal(k1, (N, n_classes), jnp.float32)
    pred = jax.nn.log_softmax(logits, axis=-1)           # NLLLoss expects log-probs
    target = jax.random.randint(k2, (N,), 0, n_classes)
    mask = (jax.random.uniform(k3, (batch, seq_len)) > 0.3).astype(jnp.float32)
    mask = mask.at[0, 0].set(1.0)                        # avoid an all-zero mask
    weight = jax.random.uniform(k4, (n_classes,), jnp.float32, 0.5, 1.5)

    loss_u = masked_nll_loss(pred, target, mask, weight=None)
    loss_w = masked_nll_loss(pred, target, mask, weight=weight)
    jax.block_until_ready((loss_u, loss_w))

    ref_u = _reference(pred, target, mask, weight=None)
    ref_w = _reference(pred, target, mask, weight=weight)

    assert jnp.allclose(loss_u, ref_u, rtol=1e-5, atol=1e-5), (loss_u, ref_u)
    assert jnp.allclose(loss_w, ref_w, rtol=1e-5, atol=1e-5), (loss_w, ref_w)
    print("KERNEL_OK")
</pallas_src>

<mosaic_0001>
module attributes {stable_mosaic.version = 11 : i64} {
  func.func @_masked_nll_kernel(%arg0: i32, %arg1: i32, %arg2: memref<7x128xf32, #tpu.memory_space<vmem>>, %arg3: memref<1x128xi32, #tpu.memory_space<vmem>>, %arg4: memref<1x128xf32, #tpu.memory_space<vmem>>, %arg5: memref<7x1xf32, #tpu.memory_space<vmem>>, %arg6: memref<1x1x1xf32, #tpu.memory_space<vmem>>, %arg7: memref<1x1x1xf32, #tpu.memory_space<vmem>>, %arg8: memref<7x128xf32, #tpu.memory_space<vmem>>, %arg9: memref<7x128xf32, #tpu.memory_space<vmem>>) attributes {dimension_semantics = [#tpu.dimension_semantics<parallel>, #tpu.dimension_semantics<arbitrary>], iteration_bounds = array<i64: 1, 1>, scalar_prefetch = 0 : i64, scratch_operands = 2 : i64, tpu.core_type = #tpu.core_type<tc>, window_params = [{transform_indices = @transform_0, window_bounds = array<i64: 7, 128>}, {transform_indices = @transform_1, window_bounds = array<i64: 1, 128>}, {transform_indices = @transform_2, window_bounds = array<i64: 1, 128>}, {pipeline_mode = #tpu.pipeline_mode<synchronous>, transform_indices = @transform_3, window_bounds = array<i64: 7, 1>}, {transform_indices = @transform_4, window_bounds = array<i64: 1, 1, 1>}, {transform_indices = @transform_5, window_bounds = array<i64: 1, 1, 1>}]} {
    %c0_i32 = arith.constant 0 : i32
    %0 = arith.cmpi eq, %arg1, %c0_i32 : i32
    %1 = arith.extui %0 : i1 to i32
    %c0_i32_0 = arith.constant 0 : i32
    %2 = arith.cmpi ne, %1, %c0_i32_0 : i32
    scf.if %2 {
      %cst_16 = arith.constant 0.000000e+00 : f32
      %23 = vector.broadcast %cst_16 : f32 to vector<7x128xf32>
      %c0_17 = arith.constant 0 : index
      %c0_18 = arith.constant 0 : index
      %24 = vector.load %arg8[%c0_17, %c0_18] : memref<7x128xf32, #tpu.memory_space<vmem>>, vector<7x128xf32>
      tpu.vector_store %arg8[%c0_17, %c0_18], %23 {strides = array<i32>} : memref<7x128xf32, #tpu.memory_space<vmem>>, vector<7x128xf32>,
      %cst_19 = arith.constant 0.000000e+00 : f32
      %25 = vector.broadcast %cst_19 : f32 to vector<7x128xf32>
      %c0_20 = arith.constant 0 : index
      %c0_21 = arith.constant 0 : index
      %26 = vector.load %arg9[%c0_20, %c0_21] : memref<7x128xf32, #tpu.memory_space<vmem>>, vector<7x128xf32>
      tpu.vector_store %arg9[%c0_20, %c0_21], %25 {strides = array<i32>} : memref<7x128xf32, #tpu.memory_space<vmem>>, vector<7x128xf32>,
    } else {
    }
    %c0 = arith.constant 0 : index
    %c0_1 = arith.constant 0 : index
    %3 = vector.load %arg2[%c0, %c0_1] : memref<7x128xf32, #tpu.memory_space<vmem>>, vector<7x128xf32>
    %c0_2 = arith.constant 0 : index
    %c0_3 = arith.constant 0 : index
    %4 = vector.load %arg3[%c0_2, %c0_3] : memref<1x128xi32, #tpu.memory_space<vmem>>, vector<1x128xi32>
    %c0_4 = arith.constant 0 : index
    %c0_5 = arith.constant 0 : index
    %5 = vector.load %arg4[%c0_4, %c0_5] : memref<1x128xf32, #tpu.memory_space<vmem>>, vector<1x128xf32>
    %6 = tpu.iota {dimensions = array<i32: 0>} : vector<7x128xi32>
    %7 = vector.broadcast %4 : vector<1x128xi32> to vector<7x128xi32>
    %8 = arith.cmpi eq, %6, %7 : vector<7x128xi32>
    %cst = arith.constant 0.000000e+00 : f32
    %9 = vector.shape_cast %5 : vector<1x128xf32> to vector<1x128xf32>
    %10 = vector.broadcast %9 : vector<1x128xf32> to vector<7x128xf32>
    %11 = vector.broadcast %cst : f32 to vector<7x128xf32>
    %12 = arith.select %8, %10, %11 : vector<7x128xi1>, vector<7x128xf32>
    %c0_6 = arith.constant 0 : index
    %c0_7 = arith.constant 0 : index
    %13 = vector.load %arg8[%c0_6, %c0_7] : memref<7x128xf32, #tpu.memory_space<vmem>>, vector<7x128xf32>
    %14 = arith.mulf %12, %3 : vector<7x128xf32>
    %15 = arith.addf %13, %14 : vector<7x128xf32>
    %c0_8 = arith.constant 0 : index
    %c0_9 = arith.constant 0 : index
    %16 = vector.load %arg8[%c0_8, %c0_9] : memref<7x128xf32, #tpu.memory_space<vmem>>, vector<7x128xf32>
    tpu.vector_store %arg8[%c0_8, %c0_9], %15 {strides = array<i32>} : memref<7x128xf32, #tpu.memory_space<vmem>>, vector<7x128xf32>,
    %c0_10 = arith.constant 0 : index
    %c0_11 = arith.constant 0 : index
    %17 = vector.load %arg9[%c0_10, %c0_11] : memref<7x128xf32, #tpu.memory_space<vmem>>, vector<7x128xf32>
    %18 = arith.addf %17, %12 : vector<7x128xf32>
    %c0_12 = arith.constant 0 : index
    %c0_13 = arith.constant 0 : index
    %19 = vector.load %arg9[%c0_12, %c0_13] : memref<7x128xf32, #tpu.memory_space<vmem>>, vector<7x128xf32>
    tpu.vector_store %arg9[%c0_12, %c0_13], %18 {strides = array<i32>} : memref<7x128xf32, #tpu.memory_space<vmem>>, vector<7x128xf32>,
    %c0_i32_14 = arith.constant 0 : i32
    %20 = arith.cmpi eq, %arg1, %c0_i32_14 : i32
    %21 = arith.extui %20 : i1 to i32
    %c0_i32_15 = arith.constant 0 : i32
    %22 = arith.cmpi ne, %21, %c0_i32_15 : i32
    scf.if %22 {
      %c0_16 = arith.constant 0 : index
      %c0_17 = arith.constant 0 : index
      %23 = vector.load %arg5[%c0_16, %c0_17] : memref<7x1xf32, #tpu.memory_space<vmem>>, vector<7x1xf32>
      %c0_18 = arith.constant 0 : index
      %c0_19 = arith.constant 0 : index
      %24 = vector.load %arg8[%c0_18, %c0_19] : memref<7x128xf32, #tpu.memory_space<vmem>>, vector<7x128xf32>
      %cst_20 = arith.constant dense<0.000000e+00> : vector<7xf32>
      %25 = vector.multi_reduction <add>, %24, %cst_20 [1] : vector<7x128xf32> to vector<7xf32>
      %26 = vector.shape_cast %25 : vector<7xf32> to vector<7x1xf32>
      %c0_21 = arith.constant 0 : index
      %c0_22 = arith.constant 0 : index
      %27 = vector.load %arg9[%c0_21, %c0_22] : memref<7x128xf32, #tpu.memory_space<vmem>>, vector<7x128xf32>
      %cst_23 = arith.constant dense<0.000000e+00> : vector<7xf32>
      %28 = vector.multi_reduction <add>, %27, %cst_23 [1] : vector<7x128xf32> to vector<7xf32>
      %29 = vector.shape_cast %28 : vector<7xf32> to vector<7x1xf32>
      %30 = arith.mulf %23, %26 : vector<7x1xf32>
      %cst_24 = arith.constant dense<0.000000e+00> : vector<1xf32>
      %31 = vector.multi_reduction <add>, %30, %cst_24 [0] : vector<7x1xf32> to vector<1xf32>
      %32 = vector.shape_cast %31 : vector<1xf32> to vector<1x1xf32>
      %c0_25 = arith.constant 0 : index
      %c0_26 = arith.constant 0 : index
      %c0_27 = arith.constant 0 : index
      %33 = vector.load %arg6[%c0_25, %c0_26, %c0_27] : memref<1x1x1xf32, #tpu.memory_space<vmem>>, vector<1x1x1xf32>
      %34 = vector.shape_cast %33 : vector<1x1x1xf32> to vector<1x1xf32>
      %35 = vector.shape_cast %32 : vector<1x1xf32> to vector<1x1x1xf32>
      tpu.vector_store %arg6[%c0_25, %c0_26, %c0_27], %35 {strides = array<i32>} : memref<1x1x1xf32, #tpu.memory_space<vmem>>, vector<1x1x1xf32>,
      %36 = arith.mulf %23, %29 : vector<7x1xf32>
      %cst_28 = arith.constant dense<0.000000e+00> : vector<1xf32>
      %37 = vector.multi_reduction <add>, %36, %cst_28 [0] : vector<7x1xf32> to vector<1xf32>
      %38 = vector.shape_cast %37 : vector<1xf32> to vector<1x1xf32>
      %c0_29 = arith.constant 0 : index
      %c0_30 = arith.constant 0 : index
      %c0_31 = arith.constant 0 : index
      %39 = vector.load %arg7[%c0_29, %c0_30, %c0_31] : memref<1x1x1xf32, #tpu.memory_space<vmem>>, vector<1x1x1xf32>
      %40 = vector.shape_cast %39 : vector<1x1x1xf32> to vector<1x1xf32>
      %41 = vector.shape_cast %38 : vector<1x1xf32> to vector<1x1x1xf32>
      tpu.vector_store %arg7[%c0_29, %c0_30, %c0_31], %41 {strides = array<i32>} : memref<1x1x1xf32, #tpu.memory_space<vmem>>, vector<1x1x1xf32>,
    } else {
    }
    return
  }
  func.func @transform_0(%arg0: i32, %arg1: i32) -> (i32, i32) {
    %c1_i32 = arith.constant 1 : i32
    %0 = arith.muli %arg0, %c1_i32 : i32
    %1 = arith.addi %0, %arg1 : i32
    %c0_i32 = arith.constant 0 : i32
    %c0_i32_0 = arith.constant 0 : i32
    return %c0_i32, %1 : i32, i32
  }
  func.func @transform_1(%arg0: i32, %arg1: i32) -> (i32, i32) {
    %c1_i32 = arith.constant 1 : i32
    %0 = arith.muli %arg0, %c1_i32 : i32
    %1 = arith.addi %0, %arg1 : i32
    %c0_i32 = arith.constant 0 : i32
    %c0_i32_0 = arith.constant 0 : i32
    return %c0_i32, %1 : i32, i32
  }
  func.func @transform_2(%arg0: i32, %arg1: i32) -> (i32, i32) {
    %c1_i32 = arith.constant 1 : i32
    %0 = arith.muli %arg0, %c1_i32 : i32
    %1 = arith.addi %0, %arg1 : i32
    %c0_i32 = arith.constant 0 : i32
    %c0_i32_0 = arith.constant 0 : i32
    return %c0_i32, %1 : i32, i32
  }
  func.func @transform_3(%arg0: i32, %arg1: i32) -> (i32, i32) {
    %c0_i32 = arith.constant 0 : i32
    %c0_i32_0 = arith.constant 0 : i32
    %c0_i32_1 = arith.constant 0 : i32
    return %c0_i32, %c0_i32_0 : i32, i32
  }
  func.func @transform_4(%arg0: i32, %arg1: i32) -> (i32, i32, i32) {
    %c0_i32 = arith.constant 0 : i32
    %c0_i32_0 = arith.constant 0 : i32
    %c0_i32_1 = arith.constant 0 : i32
    return %arg0, %c0_i32, %c0_i32_0 : i32, i32, i32
  }
  func.func @transform_5(%arg0: i32, %arg1: i32) -> (i32, i32, i32) {
    %c0_i32 = arith.constant 0 : i32
    %c0_i32_0 = arith.constant 0 : i32
    %c0_i32_1 = arith.constant 0 : i32
    return %arg0, %c0_i32, %c0_i32_0 : i32, i32, i32
  }
}

</mosaic_0001>

<llo_original>
// kernel: tpu_custom_call.1
$region0: #{tpu_custom_call.1}
  #allocation0 [shape = 'u32[]', space=smem, size = 0x4, offset = 0x4, fixed_abs, tag = 'smem constant byte address 0x4 - core index']
  #allocation1 [shape = 'u32[144,128]{1,0:T(1,128)}', space=vmem, size = 0x12000, scoped, tag = 'internal scratch']
  #allocation2 [shape = 'f32[7,128]{1,0:T(8,128)}', space=vmem, size = 0x1000, scoped, tag = 'scratch operand']
  #allocation3 [shape = 'f32[7,128]{1,0:T(8,128)}', space=vmem, size = 0x1000, scoped, tag = 'scratch operand']
  %s0 = inlined_call_operand.vmem [shape: f32[7,128], index: 0, kind: input, shape index: {}]
  %s1 = inlined_call_operand.vmem [shape: s32[1,128], index: 1, kind: input, shape index: {}]
  %s2 = inlined_call_operand.vmem [shape: f32[1,128], index: 2, kind: input, shape index: {}]
  %s3 = inlined_call_operand.vmem [shape: f32[7,1], index: 3, kind: input, shape index: {}]
  %s4 = inlined_call_operand.hbm [shape: f32[1,1,1], index: 4, kind: output, shape index: {0}]
  %s5 = inlined_call_operand.hbm [shape: f32[1,1,1], index: 5, kind: output, shape index: {1}]
  %6 = xla_tuple %s4, %s5
  %s7 = sld [smem:[#allocation0]]
  $region42: #{tpu_custom_call.1} parent=0
    _
  %s9 = ssub.s32 1, %s7
  %s10 = scalar_select 0, %s9, %s7
  $region1: #{tpu_custom_call.1} parent=0
    #allocation4 [shape = 'u8[512]{0}', space=vmem, size = 0x400, scoped, tag = 'output window, operand 0, single buffered']
    #allocation5 [shape = 's32[1]{0}', space=sflag, size = 0x4, scoped, tag = 'scoped memory for tpu_custom_call.1']
    #allocation6 [shape = 'u8[512]{0}', space=vmem, size = 0x400, scoped, tag = 'output window, operand 1, single buffered']
    #allocation7 [shape = 's32[1]{0}', space=sflag, size = 0x4, scoped, tag = 'scoped memory for tpu_custom_call.1']
    %11 = vsyncpa [#allocation5], 0
    %12 = vsyncpa [#allocation7], 0
    // Predicated region
    $region2: #{tpu_custom_call.1} parent=1 // pred_check
      _
    $region3: #{tpu_custom_call.1} parent=1 // pred_check_branch
      %14 = sbr.rel (0) target = $region5
    $region4: #{tpu_custom_call.1} parent=1 // pred_region
      %s15 = sadd.s32 0, 0
      %p16 = scmp.lt.s32.totalorder %s15, 0
      %s17 = scalar_select %p16, %s15, 0
      %s18 = smul.addr %s17, 8
      %s19 = scalar_lea.vmem %s0, %s18
      %s20 = sadd.s32 0, 0
    $region5: #{tpu_custom_call.1} parent=1 // pred_fallthru
      _
    // Predicated region
    $region6: #{tpu_custom_call.1} parent=1 // pred_check
      _
    $region7: #{tpu_custom_call.1} parent=1 // pred_check_branch
      %22 = sbr.rel (0) target = $region9
    $region8: #{tpu_custom_call.1} parent=1 // pred_region
      %s23 = sadd.s32 0, 0
      %p24 = scmp.lt.s32.totalorder %s23, 0
      %s25 = scalar_select %p24, %s23, 0
      %s26 = scalar_lea.vmem %s1, %s25
      %s27 = sadd.s32 0, 0
    $region9: #{tpu_custom_call.1} parent=1 // pred_fallthru
      _
    // Predicated region
    $region10: #{tpu_custom_call.1} parent=1 // pred_check
      _
    $region11: #{tpu_custom_call.1} parent=1 // pred_check_branch
      %29 = sbr.rel (0) target = $region13
    $region12: #{tpu_custom_call.1} parent=1 // pred_region
      %s30 = sadd.s32 0, 0
      %p31 = scmp.lt.s32.totalorder %s30, 0
      %s32 = scalar_select %p31, %s30, 0
      %s33 = scalar_lea.vmem %s2, %s32
      %s34 = sadd.s32 0, 0
    $region13: #{tpu_custom_call.1} parent=1 // pred_fallthru
      _
    // Predicated region
    $region14: #{tpu_custom_call.1} parent=1 // pred_check
      _
    $region15: #{tpu_custom_call.1} parent=1 // pred_check_branch
      %36 = sbr.rel (0) target = $region17
    $region16: #{tpu_custom_call.1} parent=1 // pred_region
      _
    $region17: #{tpu_custom_call.1} parent=1 // pred_fallthru
      _
    %s37 = sadd.s32 0, 0
    %p38 = scmp.lt.s32.totalorder %s37, 0
    %s39 = scalar_select %p38, %s37, 0
    %s40 = smul.addr %s39, 8
    %s41 = scalar_lea.vmem %s0, %s40
    %s42 = sadd.s32 0, 0
    %p43 = scmp.lt.s32.totalorder %s42, 0
    %s44 = scalar_select %p43, %s42, 0
    %s45 = scalar_lea.vmem %s1, %s44
    %s46 = sadd.s32 0, 0
    %p47 = scmp.lt.s32.totalorder %s46, 0
    %s48 = scalar_select %p47, %s46, 0
    %s49 = scalar_lea.vmem %s2, %s48
    %s50 = sadd.s32 0, 0
    %p51 = scmp.lt.s32.totalorder %s50, 0
    %s52 = scalar_select %p51, %s50, 0
    %s53 = smul.addr %s52, 8
    %s54 = scalar_lea.vmem %s0, %s53
    %s55 = sadd.s32 0, 0
    %s56 = sadd.s32 0, 0
    %p57 = scmp.lt.s32.totalorder %s56, 0
    %s58 = scalar_select %p57, %s56, 0
    %s59 = scalar_lea.vmem %s1, %s58
    %s60 = sadd.s32 0, 0
    %s61 = sadd.s32 0, 0
    %p62 = scmp.lt.s32.totalorder %s61, 0
    %s63 = scalar_select %p62, %s61, 0
    %s64 = scalar_lea.vmem %s2, %s63
    %s65 = sadd.s32 0, 0
    %p66 = scmp.eq.s32.totalorder 0, 0
    // Predicated region
    $region18: #{tpu_custom_call.1} parent=1 // pred_check
      %p67 = pneg %p66
    $region19: #{tpu_custom_call.1} parent=1 // pred_check_branch
      %69 = sbr.rel (%p67) target = $region21
    $region20: #{tpu_custom_call.1} parent=1 // pred_region
      %70 = vst [vmem:[#allocation2] sm:$0x7f] 0.0
      %71 = vst [vmem:[#allocation3] sm:$0x7f] 0.0
    $region21: #{tpu_custom_call.1} parent=1 // pred_fallthru
      _
    %v72 = vld [vmem:[%s54] sm:$0x7f]
    %v73 = vld [vmem:[%s59] sm:$0x1]
    %v74 = vld [vmem:[%s64] sm:$0x1]
    %v75 = vlaneseq
    %v76 = vshrl.u32 %v75, 7
    %v77 = vlaneseq
    %v78 = vshrl.u32 %v77, 7
    %v79 = vsub.s32 0, %v78
    %v80 = vrot.slane %v73, %v79
    %vm81 = vcmp.eq.s32.totalorder %v76, %v80
    %v83 = vlaneseq
    %v84 = vshrl.u32 %v83, 7
    %v85 = vsub.s32 0, %v84
    %v86 = vrot.slane %v74, %v85
    %v88 = vsel %vm81, %v86, 0.0
    %v89 = vld [vmem:[#allocation2] sm:$0x7f]
    %v90 = vmul.f32 %v88, %v72
    %v91 = vadd.f32 %v89, %v90
    %92 = vst [vmem:[#allocation2] sm:$0x7f] %v91
    %v93 = vld [vmem:[#allocation3] sm:$0x7f]
    %v94 = vadd.f32 %v93, %v88
    %95 = vst [vmem:[#allocation3] sm:$0x7f] %v94
    // Predicated region
    $region22: #{tpu_custom_call.1} parent=1 // pred_check
      %p96 = pneg %p66
    $region23: #{tpu_custom_call.1} parent=1 // pred_check_branch
      %98 = sbr.rel (%p96) target = $region25
    $region24: #{tpu_custom_call.1} parent=1 // pred_region
      %v99 = vld [vmem:[%s3] sm:$0x7f]
      %v100 = vld [vmem:[#allocation2] sm:$0x7f]
      %vm101 = vcmask 1046528
      %v102 = vsel %vm101, %v100, 0.0
      %103 = vadd.xlane.f32.xlu0 %v102
      %v104 = vpop.xlane.xlu0 %103
      %v105 = vld [vmem:[#allocation3] sm:$0x7f]
      %v106 = vsel %vm101, %v105, 0.0
      %107 = vadd.xlane.f32.xlu0 %v106
      %v108 = vpop.xlane.xlu0 %107
      %v109 = vmul.f32 %v99, %v104
      %vm110 = vcmask 6144
      %v111 = vsel %vm110, %v109, 0.0
      %v112 = vrot.slane %v111, 4
      %v113 = vadd.f32 %v111, %v112
      %v114 = vrot.slane %v113, 2
      %v115 = vadd.f32 %v113, %v114
      %v116 = vrot.slane %v115, 1
      %v117 = vadd.f32 %v115, %v116
      %vm118 = vcmask 0
      %119 = vst.msk [vmem:[#allocation4] sm:$0x1] %vm118, %v117
      %v120 = vmul.f32 %v99, %v108
      %v121 = vsel %vm110, %v120, 0.0
      %v122 = vrot.slane %v121, 4
      %v123 = vadd.f32 %v121, %v122
      %v124 = vrot.slane %v123, 2
      %v125 = vadd.f32 %v123, %v124
      %v126 = vrot.slane %v125, 1
      %v127 = vadd.f32 %v125, %v126
      %128 = vst.msk [vmem:[#allocation6] sm:$0x1] %vm118, %v127
    $region25: #{tpu_custom_call.1} parent=1 // pred_fallthru
      _
    // Predicated region
    $region26: #{tpu_custom_call.1} parent=1 // pred_check
      _
    $region27: #{tpu_custom_call.1} parent=1 // pred_check_branch
      %130 = sbr.rel (0) target = $region29
    $region28: #{tpu_custom_call.1} parent=1 // pred_region
      %s132 = ssub.s32 16, 16
      %133 = vsyncadd [#allocation5], %s132
      %s135 = sshll.u32 [#allocation4], 4
      %s136 = int_to_ptr.vmem [resolvable:$true] %s135
      %138 = dma.vmem_to_hbm [thread:$0]  %s136, 16, %s4, [#allocation5]
    $region29: #{tpu_custom_call.1} parent=1 // pred_fallthru
      _
    // Predicated region
    $region30: #{tpu_custom_call.1} parent=1 // pred_check
      _
    $region31: #{tpu_custom_call.1} parent=1 // pred_check_branch
      %140 = sbr.rel (0) target = $region33
    $region32: #{tpu_custom_call.1} parent=1 // pred_region
      %s142 = ssub.s32 16, 16
      %143 = vsyncadd [#allocation7], %s142
      %s145 = sshll.u32 [#allocation6], 4
      %s146 = int_to_ptr.vmem [resolvable:$true] %s145
      %148 = dma.vmem_to_hbm [thread:$0]  %s146, 16, %s5, [#allocation7]
    $region33: #{tpu_custom_call.1} parent=1 // pred_fallthru
      _
    // Predicated region
    $region34: #{tpu_custom_call.1} parent=1 // pred_check
      _
    $region35: #{tpu_custom_call.1} parent=1 // pred_check_branch
      %150 = sbr.rel (0) target = $region37
    $region36: #{tpu_custom_call.1} parent=1 // pred_region
      %151 = dma.done [#allocation5], 16
    $region37: #{tpu_custom_call.1} parent=1 // pred_fallthru
      _
    // Predicated region
    $region38: #{tpu_custom_call.1} parent=1 // pred_check
      _
    $region39: #{tpu_custom_call.1} parent=1 // pred_check_branch
      %153 = sbr.rel (0) target = $region41
    $region40: #{tpu_custom_call.1} parent=1 // pred_region
      %154 = dma.done [#allocation7], 16
    $region41: #{tpu_custom_call.1} parent=1 // pred_fallthru
      _
    %155 = vsyncpa [#allocation5], 1
    %156 = vsyncpa [#allocation7], 1

</llo_original>
